<compile_context>
chip_gen: v6e
topology: v6e:2x2x1
jax: 0.10.0
libtpu: 0.0.40
codegen_flags: <defaults>
</compile_context>

<pallas_src>
import jax
import jax.numpy as jnp
from jax.experimental import pallas as pl
from jax.experimental.pallas import tpu as pltpu

_LANE = 128
_SUBLANE_F32 = 8


def _round_up(x, m):
    return (x + m - 1) // m * m


def _sublane_for(dtype):
    # Sub-32-bit dtypes pack along sublanes: f32 -> 8, bf16 -> 16, int8 -> 32.
    itemsize = jnp.dtype(dtype).itemsize
    return _SUBLANE_F32 * max(1, 4 // itemsize)


def actor_kernel(x_ref, w1_ref, b1_ref, w2_ref, b2_ref, w3_ref, b3_ref, out_ref):
    # Read biases once per grid step (no inner loop -> no repeated broadcasts).
    b1 = b1_ref[...]
    b2 = b2_ref[...]
    b3 = b3_ref[...]

    x = x_ref[...]

    # --- H1 + ReLU (MXU matmul, f32 accumulate; ReLU in f32 on the VPU) ---
    h1 = jnp.dot(x, w1_ref[...], preferred_element_type=jnp.float32)
    h1 = jnp.maximum(h1 + b1, 0.0)

    # --- H2 + ReLU ---
    h2 = jnp.dot(h1.astype(w2_ref.dtype), w2_ref[...],
                 preferred_element_type=jnp.float32)
    h2 = jnp.maximum(h2 + b2, 0.0)

    # --- H3 + tanh, written to the lane-dense (padded to 128) output slab ---
    h3 = jnp.dot(h2.astype(w3_ref.dtype), w3_ref[...],
                 preferred_element_type=jnp.float32)
    out_ref[...] = jnp.tanh(h3 + b3).astype(out_ref.dtype)


def actor_forward(state, params, *, tile_m=1024, matmul_dtype=jnp.bfloat16,
                  out_dtype=jnp.float32, return_padded=False):
    """state: [B, input_dim] f32. params: dict of w1,b1,w2,b2,w3,b3.

    matmul_dtype=bf16 (default) quantizes both weights and the input state for
    the MXU; accumulation, bias/ReLU/tanh stay float32 (~1e-2 tolerance).
    Pass matmul_dtype=jnp.float32 for exact (1e-5) agreement with the PyTorch
    reference. out_dtype=bf16 halves output writeback bytes if the consumer
    tolerates it; return_padded=True returns the (b_pad, 128k) slab directly
    and skips the wrapper slice (fuse the slice into the consumer instead).
    """
    state = jnp.asarray(state, jnp.float32)
    B, input_dim = state.shape
    density = params["w1"].shape[1]
    n_actions = params["w3"].shape[1]

    # Lane-dense output: pad final-layer width to a multiple of 128 so the
    # writeback is an unmasked vst. Padded columns are tanh(0) = 0.
    n_out_pad = _round_up(n_actions, _LANE)

    w1 = params["w1"].astype(matmul_dtype)
    w2 = params["w2"].astype(matmul_dtype)
    w3 = params["w3"].astype(matmul_dtype)
    b1 = params["b1"].astype(jnp.float32)
    b2 = params["b2"].astype(jnp.float32)
    b3 = params["b3"].astype(jnp.float32)
    if n_out_pad != n_actions:
        w3 = jnp.pad(w3, ((0, 0), (0, n_out_pad - n_actions)))
        b3 = jnp.pad(b3, ((0, 0), (0, n_out_pad - n_actions)))

    # --- Batch tiling ---
    # Sublane alignment follows the widest packing requirement among the
    # streamed tiles (state in matmul_dtype, output in out_dtype).
    sub = max(_sublane_for(matmul_dtype), _sublane_for(out_dtype), _SUBLANE_F32)
    n_tiles = max(1, pl.cdiv(B, max(int(tile_m), sub)))
    # v7x: ensure >= 2 grid steps (so "parallel" shards across both TCs) when
    # the batch is big enough to split without extra alignment padding.
    if n_tiles == 1 and B >= 2 * sub:
        n_tiles = 2
    # Balanced tiles: minimizes padded rows vs. b_pad = round_up(B, tile_m).
    tm = _round_up(pl.cdiv(B, n_tiles), sub)
    b_pad = n_tiles * tm
    if b_pad != B:
        state = jnp.pad(state, ((0, b_pad - B), (0, 0)))
    x = state.astype(matmul_dtype)

    grid = (n_tiles,)

    out_itemsize = jnp.dtype(out_dtype).itemsize
    flops = 2 * b_pad * (input_dim * density + density * density + density * n_out_pad)
    bytes_accessed = (
        x.size * x.dtype.itemsize
        + w1.size * w1.dtype.itemsize
        + w2.size * w2.dtype.itemsize
        + w3.size * w3.dtype.itemsize
        + (b1.size + b2.size + b3.size) * 4
        + b_pad * n_out_pad * out_itemsize
    )
    cost = pl.CostEstimate(
        flops=flops,
        transcendentals=b_pad * n_out_pad,
        bytes_accessed=bytes_accessed,
    )

    # VMEM estimate: pinned weights/biases (default double-buffered) plus the
    # double-buffered streaming tiles. Only raise the scoped limit when it
    # actually exceeds the default (~32 MiB) to stay v7x-safe.
    weight_bytes = sum(int(a.size) * a.dtype.itemsize
                       for a in (w1, w2, w3, b1, b2, b3))
    stream_bytes = 2 * tm * (input_dim * jnp.dtype(matmul_dtype).itemsize
                             + n_out_pad * out_itemsize)
    vmem_est = 2 * weight_bytes + stream_bytes
    vmem_limit = None
    if vmem_est > 32 * 1024 * 1024:
        vmem_limit = min(int(1.5 * vmem_est), 100 * 1024 * 1024)

    # Weights / biases: constant index_map -> resident in VMEM across all
    # batch tiles. Only the state / output tiles are pipelined.
    def pinned(shape):
        return pl.BlockSpec(shape, lambda i: (0, 0))

    out_pad = pl.pallas_call(
        actor_kernel,
        out_shape=jax.ShapeDtypeStruct((b_pad, n_out_pad), out_dtype),
        grid=grid,
        in_specs=[
            pl.BlockSpec((tm, input_dim), lambda i: (i, 0)),  # state tile (streams)
            pinned((input_dim, density)),                     # w1
            pinned((1, density)),                             # b1
            pinned((density, density)),                       # w2
            pinned((1, density)),                             # b2
            pinned((density, n_out_pad)),                     # w3 (lane-padded)
            pinned((1, n_out_pad)),                           # b3 (lane-padded)
        ],
        out_specs=pl.BlockSpec((tm, n_out_pad), lambda i: (i, 0)),
        compiler_params=pltpu.CompilerParams(
            dimension_semantics=("parallel",),  # shard batch tiles across TCs (v7x)
            vmem_limit_bytes=vmem_limit,
        ),
        cost_estimate=cost,
    )(x, w1, b1, w2, b2, w3, b3)

    if return_padded:
        return out_pad          # consumer slices/fuses; avoids extra XLA pass
    return out_pad[:B, :n_actions]


def init_actor_params(key, input_dim, n_actions, density):
    """Deterministic init mimicking torch.nn.Linear: U(-1/sqrt(fan_in), 1/sqrt(fan_in)).

    Weights are stored [in_features, out_features] (transposed from PyTorch)
    so the kernel computes x @ W + b directly on the MXU.
    """
    ks = jax.random.split(key, 6)

    def lin(kw, kb, fan_in, fan_out):
        bound = 1.0 / jnp.sqrt(jnp.float32(fan_in))
        w = jax.random.uniform(kw, (fan_in, fan_out), jnp.float32, -bound, bound)
        b = jax.random.uniform(kb, (1, fan_out), jnp.float32, -bound, bound)
        return w, b

    w1, b1 = lin(ks[0], ks[1], input_dim, density)
    w2, b2 = lin(ks[2], ks[3], density, density)
    w3, b3 = lin(ks[4], ks[5], density, n_actions)
    return {"w1": w1, "b1": b1, "w2": w2, "b2": b2, "w3": w3, "b3": b3}


def actor_reference(state, params):
    """Plain-JAX f32 reference for correctness check."""
    x = jnp.maximum(state @ params["w1"] + params["b1"], 0.0)
    x = jnp.maximum(x @ params["w2"] + params["b2"], 0.0)
    return jnp.tanh(x @ params["w3"] + params["b3"])


if __name__ == "__main__":
    key = jax.random.PRNGKey(0)
    k_params, k_s1, k_s2 = jax.random.split(key, 3)

    input_dim = 16
    n_actions = 8
    density = 256  # small hidden width consistent with the MLP structure

    params = init_actor_params(k_params, input_dim, n_actions, density)

    # Case 1: tiny batch, default bf16 matmul operands (f32 accumulation/output).
    s1 = jax.random.normal(k_s1, (8, input_dim), dtype=jnp.float32)
    out1 = jax.block_until_ready(actor_forward(s1, params))
    ref1 = actor_reference(s1, params)
    assert out1.shape == (8, n_actions)
    assert out1.dtype == jnp.float32
    assert float(jnp.max(jnp.abs(out1 - ref1))) < 3e-2

    # Case 2: awkward batch + small tile -> multi-step grid with bf16 (16-row)
    # aligned tiles and balanced padding.
    s2 = jax.random.normal(k_s2, (40, input_dim), dtype=jnp.float32)
    out2 = jax.block_until_ready(actor_forward(s2, params, tile_m=16))
    ref2 = actor_reference(s2, params)
    assert out2.shape == (40, n_actions)
    assert float(jnp.max(jnp.abs(out2 - ref2))) < 3e-2

    # Case 3: exact f32 matmul path (tight tolerance), >=2 grid steps.
    out3 = jax.block_until_ready(
        actor_forward(s2, params, matmul_dtype=jnp.float32))
    assert out3.shape == (40, n_actions)
    assert jnp.allclose(out3, ref2, atol=1e-5, rtol=1e-5)

    # Case 4: bandwidth-lean output path: bf16 padded slab, no wrapper slice.
    out4 = jax.block_until_ready(
        actor_forward(s1, params, out_dtype=jnp.bfloat16, return_padded=True))
    assert out4.dtype == jnp.bfloat16 and out4.shape[1] == 128
    assert float(jnp.max(jnp.abs(
        out4[:8, :n_actions].astype(jnp.float32) - ref1))) < 4e-2

    print("KERNEL_OK")
</pallas_src>

<mosaic_0001>
module attributes {stable_mosaic.version = 11 : i64} {
  func.func @actor_kernel(%arg0: i32, %arg1: memref<16x16xbf16, #tpu.memory_space<vmem>>, %arg2: memref<16x256xbf16, #tpu.memory_space<vmem>>, %arg3: memref<1x256xf32, #tpu.memory_space<vmem>>, %arg4: memref<256x256xbf16, #tpu.memory_space<vmem>>, %arg5: memref<1x256xf32, #tpu.memory_space<vmem>>, %arg6: memref<256x128xbf16, #tpu.memory_space<vmem>>, %arg7: memref<1x128xf32, #tpu.memory_space<vmem>>, %arg8: memref<16x128xf32, #tpu.memory_space<vmem>>) attributes {dimension_semantics = [#tpu.dimension_semantics<parallel>], iteration_bounds = array<i64: 1>, scalar_prefetch = 0 : i64, scratch_operands = 0 : i64, tpu.core_type = #tpu.core_type<tc>, window_params = [{transform_indices = @transform_0, window_bounds = array<i64: 16, 16>}, {pipeline_mode = #tpu.pipeline_mode<synchronous>, transform_indices = @transform_1, window_bounds = array<i64: 16, 256>}, {pipeline_mode = #tpu.pipeline_mode<synchronous>, transform_indices = @transform_2, window_bounds = array<i64: 1, 256>}, {pipeline_mode = #tpu.pipeline_mode<synchronous>, transform_indices = @transform_3, window_bounds = array<i64: 256, 256>}, {pipeline_mode = #tpu.pipeline_mode<synchronous>, transform_indices = @transform_4, window_bounds = array<i64: 1, 256>}, {pipeline_mode = #tpu.pipeline_mode<synchronous>, transform_indices = @transform_5, window_bounds = array<i64: 256, 128>}, {pipeline_mode = #tpu.pipeline_mode<synchronous>, transform_indices = @transform_6, window_bounds = array<i64: 1, 128>}, {transform_indices = @transform_7, window_bounds = array<i64: 16, 128>}]} {
    %c0 = arith.constant 0 : index
    %c0_0 = arith.constant 0 : index
    %0 = vector.load %arg3[%c0, %c0_0] : memref<1x256xf32, #tpu.memory_space<vmem>>, vector<1x256xf32>
    %c0_1 = arith.constant 0 : index
    %c0_2 = arith.constant 0 : index
    %1 = vector.load %arg5[%c0_1, %c0_2] : memref<1x256xf32, #tpu.memory_space<vmem>>, vector<1x256xf32>
    %c0_3 = arith.constant 0 : index
    %c0_4 = arith.constant 0 : index
    %2 = vector.load %arg7[%c0_3, %c0_4] : memref<1x128xf32, #tpu.memory_space<vmem>>, vector<1x128xf32>
    %c0_5 = arith.constant 0 : index
    %c0_6 = arith.constant 0 : index
    %3 = vector.load %arg1[%c0_5, %c0_6] : memref<16x16xbf16, #tpu.memory_space<vmem>>, vector<16x16xbf16>
    %c0_7 = arith.constant 0 : index
    %c0_8 = arith.constant 0 : index
    %4 = vector.load %arg2[%c0_7, %c0_8] : memref<16x256xbf16, #tpu.memory_space<vmem>>, vector<16x256xbf16>
    %cst = arith.constant dense<0.000000e+00> : vector<16x256xf32>
    %5 = tpu.matmul %3, %4, %cst {dimension_numbers = #tpu.dot_dimension_numbers<[1], [0], [0], [1], [0, 0, 1, 1], [], []>} : vector<16x16xbf16>, vector<16x256xbf16>, vector<16x256xf32> -> vector<16x256xf32>
    %6 = vector.broadcast %0 : vector<1x256xf32> to vector<16x256xf32>
    %7 = arith.addf %5, %6 : vector<16x256xf32>
    %cst_9 = arith.constant 0.000000e+00 : f32
    %8 = vector.broadcast %cst_9 : f32 to vector<16x256xf32>
    %9 = arith.maximumf %7, %8 : vector<16x256xf32>
    %10 = arith.truncf %9 : vector<16x256xf32> to vector<16x256xbf16>
    %c0_10 = arith.constant 0 : index
    %c0_11 = arith.constant 0 : index
    %11 = vector.load %arg4[%c0_10, %c0_11] : memref<256x256xbf16, #tpu.memory_space<vmem>>, vector<256x256xbf16>
    %cst_12 = arith.constant dense<0.000000e+00> : vector<16x256xf32>
    %12 = tpu.matmul %10, %11, %cst_12 {dimension_numbers = #tpu.dot_dimension_numbers<[1], [0], [0], [1], [0, 0, 1, 1], [], []>} : vector<16x256xbf16>, vector<256x256xbf16>, vector<16x256xf32> -> vector<16x256xf32>
    %13 = vector.broadcast %1 : vector<1x256xf32> to vector<16x256xf32>
    %14 = arith.addf %12, %13 : vector<16x256xf32>
    %cst_13 = arith.constant 0.000000e+00 : f32
    %15 = vector.broadcast %cst_13 : f32 to vector<16x256xf32>
    %16 = arith.maximumf %14, %15 : vector<16x256xf32>
    %17 = arith.truncf %16 : vector<16x256xf32> to vector<16x256xbf16>
    %c0_14 = arith.constant 0 : index
    %c0_15 = arith.constant 0 : index
    %18 = vector.load %arg6[%c0_14, %c0_15] : memref<256x128xbf16, #tpu.memory_space<vmem>>, vector<256x128xbf16>
    %cst_16 = arith.constant dense<0.000000e+00> : vector<16x128xf32>
    %19 = tpu.matmul %17, %18, %cst_16 {dimension_numbers = #tpu.dot_dimension_numbers<[1], [0], [0], [1], [0, 0, 1, 1], [], []>} : vector<16x256xbf16>, vector<256x128xbf16>, vector<16x128xf32> -> vector<16x128xf32>
    %20 = vector.broadcast %2 : vector<1x128xf32> to vector<16x128xf32>
    %21 = arith.addf %19, %20 : vector<16x128xf32>
    %22 = math.tanh %21 : vector<16x128xf32>
    %c0_17 = arith.constant 0 : index
    %c0_18 = arith.constant 0 : index
    %23 = vector.load %arg8[%c0_17, %c0_18] : memref<16x128xf32, #tpu.memory_space<vmem>>, vector<16x128xf32>
    tpu.vector_store %arg8[%c0_17, %c0_18], %22 {strides = array<i32>} : memref<16x128xf32, #tpu.memory_space<vmem>>, vector<16x128xf32>,
    return
  }
  func.func @transform_0(%arg0: i32) -> (i32, i32) {
    %c0_i32 = arith.constant 0 : i32
    %c0_i32_0 = arith.constant 0 : i32
    return %arg0, %c0_i32 : i32, i32
  }
  func.func @transform_1(%arg0: i32) -> (i32, i32) {
    %c0_i32 = arith.constant 0 : i32
    %c0_i32_0 = arith.constant 0 : i32
    %c0_i32_1 = arith.constant 0 : i32
    return %c0_i32, %c0_i32_0 : i32, i32
  }
  func.func @transform_2(%arg0: i32) -> (i32, i32) {
    %c0_i32 = arith.constant 0 : i32
    %c0_i32_0 = arith.constant 0 : i32
    %c0_i32_1 = arith.constant 0 : i32
    return %c0_i32, %c0_i32_0 : i32, i32
  }
  func.func @transform_3(%arg0: i32) -> (i32, i32) {
    %c0_i32 = arith.constant 0 : i32
    %c0_i32_0 = arith.constant 0 : i32
    %c0_i32_1 = arith.constant 0 : i32
    return %c0_i32, %c0_i32_0 : i32, i32
  }
  func.func @transform_4(%arg0: i32) -> (i32, i32) {
    %c0_i32 = arith.constant 0 : i32
    %c0_i32_0 = arith.constant 0 : i32
    %c0_i32_1 = arith.constant 0 : i32
    return %c0_i32, %c0_i32_0 : i32, i32
  }
  func.func @transform_5(%arg0: i32) -> (i32, i32) {
    %c0_i32 = arith.constant 0 : i32
    %c0_i32_0 = arith.constant 0 : i32
    %c0_i32_1 = arith.constant 0 : i32
    return %c0_i32, %c0_i32_0 : i32, i32
  }
  func.func @transform_6(%arg0: i32) -> (i32, i32) {
    %c0_i32 = arith.constant 0 : i32
    %c0_i32_0 = arith.constant 0 : i32
    %c0_i32_1 = arith.constant 0 : i32
    return %c0_i32, %c0_i32_0 : i32, i32
  }
  func.func @transform_7(%arg0: i32) -> (i32, i32) {
    %c0_i32 = arith.constant 0 : i32
    %c0_i32_0 = arith.constant 0 : i32
    return %arg0, %c0_i32 : i32, i32
  }
}

</mosaic_0001>

<llo_original>
// kernel: tpu_custom_call.1
$region0: #{tpu_custom_call.1}
  #allocation0 [shape = 'u32[]', space=smem, size = 0x4, offset = 0x4, fixed_abs, tag = 'smem constant byte address 0x4 - core index']
  #allocation1 [shape = 'u32[144,128]{1,0:T(1,128)}', space=vmem, size = 0x12000, scoped, tag = 'internal scratch']
  %s0 = inlined_call_operand.hbm [shape: bf16[16,16], index: 0, kind: input, shape index: {}]
  %s1 = inlined_call_operand.hbm [shape: bf16[16,256], index: 1, kind: input, shape index: {}]
  %s2 = inlined_call_operand.vmem [shape: f32[1,256], index: 2, kind: input, shape index: {}]
  %s3 = inlined_call_operand.hbm [shape: bf16[256,256], index: 3, kind: input, shape index: {}]
  %s4 = inlined_call_operand.vmem [shape: f32[1,256], index: 4, kind: input, shape index: {}]
  %s5 = inlined_call_operand.hbm [shape: bf16[256,128], index: 5, kind: input, shape index: {}]
  %s6 = inlined_call_operand.vmem [shape: f32[1,128], index: 6, kind: input, shape index: {}]
  %s7 = inlined_call_operand.hbm [shape: f32[16,128], index: 7, kind: output, shape index: {}]
  %s8 = sld [smem:[#allocation0]]
  $region54: #{tpu_custom_call.1} parent=0
    _
  %s10 = ssub.s32 1, %s8
  %s11 = scalar_select 0, %s10, %s8
  $region1: #{tpu_custom_call.1} parent=0
    #allocation2 [shape = 'u8[4096]{0}', space=vmem, size = 0x1000, scoped, tag = 'input window, operand 0, single buffered']
    #allocation3 [shape = 's32[1]{0}', space=sflag, size = 0x4, scoped, tag = 'scoped memory for tpu_custom_call.1']
    #allocation4 [shape = 's32[1]{0}', space=sflag, size = 0x4, scoped, tag = 'scoped memory for tpu_custom_call.1']
    #allocation5 [shape = 'u8[8192]{0}', space=vmem, size = 0x2000, scoped, tag = 'input window, operand 1, single buffered']
    #allocation6 [shape = 's32[1]{0}', space=sflag, size = 0x4, scoped, tag = 'scoped memory for tpu_custom_call.1']
    #allocation7 [shape = 'u8[131072]{0}', space=vmem, size = 0x20000, scoped, tag = 'input window, operand 3, single buffered']
    #allocation8 [shape = 'u8[65536]{0}', space=vmem, size = 0x10000, scoped, tag = 'input window, operand 5, single buffered']
    #allocation9 [shape = 's32[1]{0}', space=sflag, size = 0x4, scoped, tag = 'scoped memory for tpu_custom_call.1']
    #allocation10 [shape = 'u8[8192]{0}', space=vmem, size = 0x2000, scoped, tag = 'output window, operand 0, single buffered']
    %12 = vsyncpa [#allocation3], 0
    %13 = vsyncpa [#allocation6], 0
    %14 = vsyncpa [#allocation9], 0
    %15 = vsyncpa [#allocation4], 0
    // Predicated region
    $region2: #{tpu_custom_call.1} parent=1 // pred_check
      _
    $region3: #{tpu_custom_call.1} parent=1 // pred_check_branch
      %17 = sbr.rel (0) target = $region5
    $region4: #{tpu_custom_call.1} parent=1 // pred_region
      %s19 = ssub.s32 128, 128
      %20 = vsyncadd [#allocation3], %s19
      %s21 = sshll.u32 [#allocation2], 4
      %s22 = int_to_ptr.vmem [resolvable:$true] %s21
      %27 = dma.hbm_to_vmem [thread:$0]  %s0, 128, %s22, [#allocation3], 64, 64, 4
    $region5: #{tpu_custom_call.1} parent=1 // pred_fallthru
      _
    // Predicated region
    $region6: #{tpu_custom_call.1} parent=1 // pred_check
      _
    $region7: #{tpu_custom_call.1} parent=1 // pred_check_branch
      %29 = sbr.rel (0) target = $region9
    $region8: #{tpu_custom_call.1} parent=1 // pred_region
      %s31 = ssub.s32 256, 256
      %32 = vsyncadd [#allocation6], %s31
      %s33 = sshll.u32 [#allocation5], 4
      %s34 = int_to_ptr.vmem [resolvable:$true] %s33
      %39 = dma.hbm_to_vmem [thread:$0]  %s1, 256, %s34, [#allocation6], 128, 128, 8
    $region9: #{tpu_custom_call.1} parent=1 // pred_fallthru
      _
    // Predicated region
    $region10: #{tpu_custom_call.1} parent=1 // pred_check
      _
    $region11: #{tpu_custom_call.1} parent=1 // pred_check_branch
      %41 = sbr.rel (0) target = $region13
    $region12: #{tpu_custom_call.1} parent=1 // pred_region
      _
    $region13: #{tpu_custom_call.1} parent=1 // pred_fallthru
      _
    // Predicated region
    $region14: #{tpu_custom_call.1} parent=1 // pred_check
      _
    $region15: #{tpu_custom_call.1} parent=1 // pred_check_branch
      %43 = sbr.rel (0) target = $region17
    $region16: #{tpu_custom_call.1} parent=1 // pred_region
      %s45 = ssub.s32 4096, 4096
      %46 = vsyncadd [#allocation6], %s45
      %s47 = sshll.u32 [#allocation7], 4
      %s48 = int_to_ptr.vmem [resolvable:$true] %s47
      %53 = dma.hbm_to_vmem [thread:$0]  %s3, 4096, %s48, [#allocation6], 128, 128, 8
    $region17: #{tpu_custom_call.1} parent=1 // pred_fallthru
      _
    // Predicated region
    $region18: #{tpu_custom_call.1} parent=1 // pred_check
      _
    $region19: #{tpu_custom_call.1} parent=1 // pred_check_branch
      %55 = sbr.rel (0) target = $region21
    $region20: #{tpu_custom_call.1} parent=1 // pred_region
      _
    $region21: #{tpu_custom_call.1} parent=1 // pred_fallthru
      _
    // Predicated region
    $region22: #{tpu_custom_call.1} parent=1 // pred_check
      _
    $region23: #{tpu_custom_call.1} parent=1 // pred_check_branch
      %57 = sbr.rel (0) target = $region25
    $region24: #{tpu_custom_call.1} parent=1 // pred_region
      %s59 = ssub.s32 2048, 2048
      %60 = vsyncadd [#allocation9], %s59
      %s61 = sshll.u32 [#allocation8], 4
      %s62 = int_to_ptr.vmem [resolvable:$true] %s61
      %67 = dma.hbm_to_vmem [thread:$0]  %s5, 2048, %s62, [#allocation9], 64, 64, 4
    $region25: #{tpu_custom_call.1} parent=1 // pred_fallthru
      _
    // Predicated region
    $region26: #{tpu_custom_call.1} parent=1 // pred_check
      _
    $region27: #{tpu_custom_call.1} parent=1 // pred_check_branch
      %69 = sbr.rel (0) target = $region29
    $region28: #{tpu_custom_call.1} parent=1 // pred_region
      _
    $region29: #{tpu_custom_call.1} parent=1 // pred_fallthru
      _
    // Predicated region
    $region30: #{tpu_custom_call.1} parent=1 // pred_check
      _
    $region31: #{tpu_custom_call.1} parent=1 // pred_check_branch
      %71 = sbr.rel (0) target = $region33
    $region32: #{tpu_custom_call.1} parent=1 // pred_region
      %72 = dma.done [#allocation3], 128
    $region33: #{tpu_custom_call.1} parent=1 // pred_fallthru
      _
    // Predicated region
    $region34: #{tpu_custom_call.1} parent=1 // pred_check
      _
    $region35: #{tpu_custom_call.1} parent=1 // pred_check_branch
      %74 = sbr.rel (0) target = $region37
    $region36: #{tpu_custom_call.1} parent=1 // pred_region
      %75 = dma.done [#allocation6], 256
    $region37: #{tpu_custom_call.1} parent=1 // pred_fallthru
      _
    // Predicated region
    $region38: #{tpu_custom_call.1} parent=1 // pred_check
      _
    $region39: #{tpu_custom_call.1} parent=1 // pred_check_branch
      %77 = sbr.rel (0) target = $region41
    $region40: #{tpu_custom_call.1} parent=1 // pred_region
      %78 = dma.done [#allocation6], 4096
    $region41: #{tpu_custom_call.1} parent=1 // pred_fallthru
      _
    // Predicated region
    $region42: #{tpu_custom_call.1} parent=1 // pred_check
      _
    $region43: #{tpu_custom_call.1} parent=1 // pred_check_branch
      %80 = sbr.rel (0) target = $region45
    $region44: #{tpu_custom_call.1} parent=1 // pred_region
      %81 = dma.done [#allocation9], 2048
    $region45: #{tpu_custom_call.1} parent=1 // pred_fallthru
      _
    %v83 = vld [vmem:[%s2] sm:$0x3]
    %v84 = vld [vmem:[%s4] sm:$0x3]
    %v85 = vld [vmem:[%s6] sm:$0x1]
    %v86 = vld [vmem:[#allocation2] sm:$0xf]
    %v87 = vld [vmem:[#allocation2 + $0x4] sm:$0xf]
    %v88 = vld [vmem:[#allocation5] sm:$0xff]
    %v89 = vld [vmem:[#allocation5 + $0x8] sm:$0xff]
    %v91 = vlaneseq
    %v92 = vshrl.u32 %v91, 7
    %v93 = vsub.s32 0, %v92
    %v94 = vrot.slane %v83, %v93
    %v95 = vlaneseq
    %v96 = vshrl.u32 %v95, 7
    %v97 = vsub.s32 1, %v96
    %v98 = vrot.slane %v83, %v97
    %v103 = vunpack.c.l.b16 %v86
    %v104 = vunpack.c.l.b16 %v87
    %v105 = vpack.c.b16 %v104, %v103
    %v108 = vunpack.c.l.b16 %v88
    %v109 = vunpack.c.h.b16 %v88
    %v110 = vunpack.c.l.b16 %v89
    %v111 = vunpack.c.h.b16 %v89
    %v112 = vpack.c.b16 %v110, %v108
    %v113 = vpack.c.b16 %v111, %v109
    %vm116 = vcmask 130048
    %v118 = vsel %vm116, %v105, 0
    %120 = vmatprep.subr.bf16.mxu0 0
    %121 = vmatpush1.bf16.msra.mxu0 0
    %122 = vmatprep.subr.bf16.mxu0 0
    %123 = vmatpush1.bf16.msra.mxu0 0
    %124 = vmatprep.subr.bf16.mxu0 0
    %125 = vmatpush1.bf16.msra.mxu0 0
    %126 = vmatprep.subr.bf16.mxu0 0
    %127 = vmatpush1.bf16.msra.mxu0 0
    %128 = vmatprep.subr.bf16.mxu0 0
    %129 = vmatpush1.bf16.msra.mxu0 0
    %130 = vmatprep.subr.bf16.mxu0 0
    %131 = vmatpush1.bf16.msra.mxu0 0
    %132 = vmatprep.subr.bf16.mxu0 0
    %133 = vmatpush1.bf16.msra.mxu0 0
    %134 = vmatprep.subr.bf16.mxu0 %v113
    %135 = vmatpush1.bf16.msra.mxu0 %v112
    %136 = vmatprep.subr.bf16.mxu0 0
    %137 = vmatpush2.bf16.msra.mxu0 0
    %138 = vmatprep.subr.bf16.mxu0 0
    %139 = vmatpush2.bf16.msra.mxu0 0
    %140 = vmatprep.subr.bf16.mxu0 0
    %141 = vmatpush2.bf16.msra.mxu0 0
    %142 = vmatprep.subr.bf16.mxu0 0
    %143 = vmatpush2.bf16.msra.mxu0 0
    %144 = vmatprep.subr.bf16.mxu0 0
    %145 = vmatpush2.bf16.msra.mxu0 0
    %146 = vmatprep.subr.bf16.mxu0 0
    %147 = vmatpush2.bf16.msra.mxu0 0
    %148 = vmatprep.subr.bf16.mxu0 0
    %149 = vmatpush2.bf16.msra.mxu0 0
    %150 = vmatprep.subr.bf16.mxu0 0
    %151 = vmatpush2.bf16.msra.mxu0 0
    %152 = vmatprep.mubr.bf16.mxu0 0
    %153 = vmatmul.mubr.bf16.gmra.mxu0 %v118
    %v154 = vpop.f32.mrf.mxu0
    %v155 = vadd.f32 %v94, %v154
    %v156 = vpop.f32.mrf.mxu0
    %v157 = vadd.f32 %v98, %v156
    %v158 = vpop.f32.mrf.mxu0
    %v159 = vadd.f32 %v94, %v158
    %v160 = vpop.f32.mrf.mxu0
    %v161 = vadd.f32 %v98, %v160
    %162 = vdwg.mxu0
    %v163 = vmax.f32 %v155, 0.0
    %v164 = vmax.f32 %v157, 0.0
    %v165 = vmax.f32 %v159, 0.0
    %v166 = vmax.f32 %v161, 0.0
    %v167 = vpack.c.bf16 %v165, %v163
    %v168 = vpack.c.bf16 %v166, %v164
    %v169 = vld [vmem:[#allocation7] sm:$0xff]
    %v170 = vld [vmem:[#allocation7 + $0x8] sm:$0xff]
    %v171 = vld [vmem:[#allocation7 + $0x10] sm:$0xff]
    %v172 = vld [vmem:[#allocation7 + $0x18] sm:$0xff]
    %v173 = vld [vmem:[#allocation7 + $0x20] sm:$0xff]
    %v174 = vld [vmem:[#allocation7 + $0x28] sm:$0xff]
    %v175 = vld [vmem:[#allocation7 + $0x30] sm:$0xff]
    %v176 = vld [vmem:[#allocation7 + $0x38] sm:$0xff]
    %v177 = vld [vmem:[#allocation7 + $0x40] sm:$0xff]
    %v178 = vld [vmem:[#allocation7 + $0x48] sm:$0xff]
    %v179 = vld [vmem:[#allocation7 + $0x50] sm:$0xff]
    %v180 = vld [vmem:[#allocation7 + $0x58] sm:$0xff]
    %v181 = vld [vmem:[#allocation7 + $0x60] sm:$0xff]
    %v182 = vld [vmem:[#allocation7 + $0x68] sm:$0xff]
    %v183 = vld [vmem:[#allocation7 + $0x70] sm:$0xff]
    %v184 = vld [vmem:[#allocation7 + $0x78] sm:$0xff]
    %v185 = vld [vmem:[#allocation7 + $0x80] sm:$0xff]
    %v186 = vld [vmem:[#allocation7 + $0x88] sm:$0xff]
    %v187 = vld [vmem:[#allocation7 + $0x90] sm:$0xff]
    %v188 = vld [vmem:[#allocation7 + $0x98] sm:$0xff]
    %v189 = vld [vmem:[#allocation7 + $0xa0] sm:$0xff]
    %v190 = vld [vmem:[#allocation7 + $0xa8] sm:$0xff]
    %v191 = vld [vmem:[#allocation7 + $0xb0] sm:$0xff]
    %v192 = vld [vmem:[#allocation7 + $0xb8] sm:$0xff]
    %v193 = vld [vmem:[#allocation7 + $0xc0] sm:$0xff]
    %v194 = vld [vmem:[#allocation7 + $0xc8] sm:$0xff]
    %v195 = vld [vmem:[#allocation7 + $0xd0] sm:$0xff]
    %v196 = vld [vmem:[#allocation7 + $0xd8] sm:$0xff]
    %v197 = vld [vmem:[#allocation7 + $0xe0] sm:$0xff]
    %v198 = vld [vmem:[#allocation7 + $0xe8] sm:$0xff]
    %v199 = vld [vmem:[#allocation7 + $0xf0] sm:$0xff]
    %v200 = vld [vmem:[#allocation7 + $0xf8] sm:$0xff]
    %v202 = vlaneseq
    %v203 = vshrl.u32 %v202, 7
    %v204 = vsub.s32 0, %v203
    %v205 = vrot.slane %v84, %v204
    %v206 = vlaneseq
    %v207 = vshrl.u32 %v206, 7
    %v208 = vsub.s32 1, %v207
    %v209 = vrot.slane %v84, %v208
    %v244 = vunpack.c.l.b16 %v169
    %v245 = vunpack.c.h.b16 %v169
    %v246 = vunpack.c.l.b16 %v170
    %v247 = vunpack.c.h.b16 %v170
    %v248 = vunpack.c.l.b16 %v171
    %v249 = vunpack.c.h.b16 %v171
    %v250 = vunpack.c.l.b16 %v172
    %v251 = vunpack.c.h.b16 %v172
    %v252 = vunpack.c.l.b16 %v173
    %v253 = vunpack.c.h.b16 %v173
    %v254 = vunpack.c.l.b16 %v174
    %v255 = vunpack.c.h.b16 %v174
    %v256 = vunpack.c.l.b16 %v175
    %v257 = vunpack.c.h.b16 %v175
    %v258 = vunpack.c.l.b16 %v176
    %v259 = vunpack.c.h.b16 %v176
    %v260 = vunpack.c.l.b16 %v177
    %v261 = vunpack.c.h.b16 %v177
    %v262 = vunpack.c.l.b16 %v178
    %v263 = vunpack.c.h.b16 %v178
    %v264 = vunpack.c.l.b16 %v179
    %v265 = vunpack.c.h.b16 %v179
    %v266 = vunpack.c.l.b16 %v180
    %v267 = vunpack.c.h.b16 %v180
    %v268 = vunpack.c.l.b16 %v181
    %v269 = vunpack.c.h.b16 %v181
    %v270 = vunpack.c.l.b16 %v182
    %v271 = vunpack.c.h.b16 %v182
    %v272 = vunpack.c.l.b16 %v183
    %v273 = vunpack.c.h.b16 %v183
    %v274 = vunpack.c.l.b16 %v184
    %v275 = vunpack.c.h.b16 %v184
    %v276 = vunpack.c.l.b16 %v185
    %v277 = vunpack.c.h.b16 %v185
    %v278 = vunpack.c.l.b16 %v186
    %v279 = vunpack.c.h.b16 %v186
    %v280 = vunpack.c.l.b16 %v187
    %v281 = vunpack.c.h.b16 %v187
    %v282 = vunpack.c.l.b16 %v188
    %v283 = vunpack.c.h.b16 %v188
    %v284 = vunpack.c.l.b16 %v189
    %v285 = vunpack.c.h.b16 %v189
    %v286 = vunpack.c.l.b16 %v190
    %v287 = vunpack.c.h.b16 %v190
    %v288 = vunpack.c.l.b16 %v191
    %v289 = vunpack.c.h.b16 %v191
    %v290 = vunpack.c.l.b16 %v192
    %v291 = vunpack.c.h.b16 %v192
    %v292 = vunpack.c.l.b16 %v193
    %v293 = vunpack.c.h.b16 %v193
    %v294 = vunpack.c.l.b16 %v194
    %v295 = vunpack.c.h.b16 %v194
    %v296 = vunpack.c.l.b16 %v195
    %v297 = vunpack.c.h.b16 %v195
    %v298 = vunpack.c.l.b16 %v196
    %v299 = vunpack.c.h.b16 %v196
    %v300 = vunpack.c.l.b16 %v197
    %v301 = vunpack.c.h.b16 %v197
    %v302 = vunpack.c.l.b16 %v198
    %v303 = vunpack.c.h.b16 %v198
    %v304 = vunpack.c.l.b16 %v199
    %v305 = vunpack.c.h.b16 %v199
    %v306 = vunpack.c.l.b16 %v200
    %v307 = vunpack.c.h.b16 %v200
    %v308 = vpack.c.b16 %v246, %v244
    %v309 = vpack.c.b16 %v247, %v245
    %v310 = vpack.c.b16 %v250, %v248
    %v311 = vpack.c.b16 %v251, %v249
    %v312 = vpack.c.b16 %v254, %v252
    %v313 = vpack.c.b16 %v255, %v253
    %v314 = vpack.c.b16 %v258, %v256
    %v315 = vpack.c.b16 %v259, %v257
    %v316 = vpack.c.b16 %v262, %v260
    %v317 = vpack.c.b16 %v263, %v261
    %v318 = vpack.c.b16 %v266, %v264
    %v319 = vpack.c.b16 %v267, %v265
    %v320 = vpack.c.b16 %v270, %v268
    %v321 = vpack.c.b16 %v271, %v269
    %v322 = vpack.c.b16 %v274, %v272
    %v323 = vpack.c.b16 %v275, %v273
    %v324 = vpack.c.b16 %v278, %v276
    %v325 = vpack.c.b16 %v279, %v277
    %v326 = vpack.c.b16 %v282, %v280
    %v327 = vpack.c.b16 %v283, %v281
    %v328 = vpack.c.b16 %v286, %v284
    %v329 = vpack.c.b16 %v287, %v285
    %v330 = vpack.c.b16 %v290, %v288
    %v331 = vpack.c.b16 %v291, %v289
    %v332 = vpack.c.b16 %v294, %v292
    %v333 = vpack.c.b16 %v295, %v293
    %v334 = vpack.c.b16 %v298, %v296
    %v335 = vpack.c.b16 %v299, %v297
    %v336 = vpack.c.b16 %v302, %v300
    %v337 = vpack.c.b16 %v303, %v301
    %v338 = vpack.c.b16 %v306, %v304
    %v339 = vpack.c.b16 %v307, %v305
    %372 = vmatprep.subr.bf16.mxu0 %v323
    %373 = vmatpush1.bf16.msra.mxu0 %v322
    %374 = vmatprep.subr.bf16.mxu0 %v321
    %375 = vmatpush1.bf16.msra.mxu0 %v320
    %376 = vmatprep.subr.bf16.mxu0 %v319
    %377 = vmatpush1.bf16.msra.mxu0 %v318
    %378 = vmatprep.subr.bf16.mxu0 %v317
    %379 = vmatpush1.bf16.msra.mxu0 %v316
    %380 = vmatprep.subr.bf16.mxu0 %v315
    %381 = vmatpush1.bf16.msra.mxu0 %v314
    %382 = vmatprep.subr.bf16.mxu0 %v313
    %383 = vmatpush1.bf16.msra.mxu0 %v312
    %384 = vmatprep.subr.bf16.mxu0 %v311
    %385 = vmatpush1.bf16.msra.mxu0 %v310
    %386 = vmatprep.subr.bf16.mxu0 %v309
    %387 = vmatpush1.bf16.msra.mxu0 %v308
    %388 = vmatprep.subr.bf16.mxu0 %v339
    %389 = vmatpush2.bf16.msra.mxu0 %v338
    %390 = vmatprep.subr.bf16.mxu0 %v337
    %391 = vmatpush2.bf16.msra.mxu0 %v336
    %392 = vmatprep.subr.bf16.mxu0 %v335
    %393 = vmatpush2.bf16.msra.mxu0 %v334
    %394 = vmatprep.subr.bf16.mxu0 %v333
    %395 = vmatpush2.bf16.msra.mxu0 %v332
    %396 = vmatprep.subr.bf16.mxu0 %v331
    %397 = vmatpush2.bf16.msra.mxu0 %v330
    %398 = vmatprep.subr.bf16.mxu0 %v329
    %399 = vmatpush2.bf16.msra.mxu0 %v328
    %400 = vmatprep.subr.bf16.mxu0 %v327
    %401 = vmatpush2.bf16.msra.mxu0 %v326
    %402 = vmatprep.subr.bf16.mxu0 %v325
    %403 = vmatpush2.bf16.msra.mxu0 %v324
    %404 = vmatprep.mubr.bf16.mxu0 %v168
    %405 = vmatmul.mubr.bf16.gmra.mxu0 %v167
    %v406 = vpop.f32.mrf.mxu0
    %v407 = vadd.f32 %v205, %v406
    %v408 = vpop.f32.mrf.mxu0
    %v409 = vadd.f32 %v209, %v408
    %v410 = vpop.f32.mrf.mxu0
    %v411 = vadd.f32 %v205, %v410
    %v412 = vpop.f32.mrf.mxu0
    %v413 = vadd.f32 %v209, %v412
    %414 = vdwg.mxu0
    %v415 = vmax.f32 %v407, 0.0
    %v416 = vmax.f32 %v409, 0.0
    %v417 = vmax.f32 %v411, 0.0
    %v418 = vmax.f32 %v413, 0.0
    %v419 = vpack.c.bf16 %v417, %v415
    %v420 = vpack.c.bf16 %v418, %v416
    %v421 = vld [vmem:[#allocation8] sm:$0xf]
    %v422 = vld [vmem:[#allocation8 + $0x4] sm:$0xf]
    %v423 = vld [vmem:[#allocation8 + $0x8] sm:$0xf]
    %v424 = vld [vmem:[#allocation8 + $0xc] sm:$0xf]
    %v425 = vld [vmem:[#allocation8 + $0x10] sm:$0xf]
    %v426 = vld [vmem:[#allocation8 + $0x14] sm:$0xf]
    %v427 = vld [vmem:[#allocation8 + $0x18] sm:$0xf]
    %v428 = vld [vmem:[#allocation8 + $0x1c] sm:$0xf]
    %v429 = vld [vmem:[#allocation8 + $0x20] sm:$0xf]
    %v430 = vld [vmem:[#allocation8 + $0x24] sm:$0xf]
    %v431 = vld [vmem:[#allocation8 + $0x28] sm:$0xf]
    %v432 = vld [vmem:[#allocation8 + $0x2c] sm:$0xf]
    %v433 = vld [vmem:[#allocation8 + $0x30] sm:$0xf]
    %v434 = vld [vmem:[#allocation8 + $0x34] sm:$0xf]
    %v435 = vld [vmem:[#allocation8 + $0x38] sm:$0xf]
    %v436 = vld [vmem:[#allocation8 + $0x3c] sm:$0xf]
    %v437 = vld [vmem:[#allocation8 + $0x40] sm:$0xf]
    %v438 = vld [vmem:[#allocation8 + $0x44] sm:$0xf]
    %v439 = vld [vmem:[#allocation8 + $0x48] sm:$0xf]
    %v440 = vld [vmem:[#allocation8 + $0x4c] sm:$0xf]
    %v441 = vld [vmem:[#allocation8 + $0x50] sm:$0xf]
    %v442 = vld [vmem:[#allocation8 + $0x54] sm:$0xf]
    %v443 = vld [vmem:[#allocation8 + $0x58] sm:$0xf]
    %v444 = vld [vmem:[#allocation8 + $0x5c] sm:$0xf]
    %v445 = vld [vmem:[#allocation8 + $0x60] sm:$0xf]
    %v446 = vld [vmem:[#allocation8 + $0x64] sm:$0xf]
    %v447 = vld [vmem:[#allocation8 + $0x68] sm:$0xf]
    %v448 = vld [vmem:[#allocation8 + $0x6c] sm:$0xf]
    %v449 = vld [vmem:[#allocation8 + $0x70] sm:$0xf]
    %v450 = vld [vmem:[#allocation8 + $0x74] sm:$0xf]
    %v451 = vld [vmem:[#allocation8 + $0x78] sm:$0xf]
    %v452 = vld [vmem:[#allocation8 + $0x7c] sm:$0xf]
    %v454 = vlaneseq
    %v455 = vshrl.u32 %v454, 7
    %v456 = vsub.s32 0, %v455
    %v457 = vrot.slane %v85, %v456
    %v491 = vunpack.c.l.b16 %v421
    %v492 = vunpack.c.l.b16 %v422
    %v493 = vunpack.c.l.b16 %v423
    %v494 = vunpack.c.l.b16 %v424
    %v495 = vunpack.c.l.b16 %v425
    %v496 = vunpack.c.l.b16 %v426
    %v497 = vunpack.c.l.b16 %v427
    %v498 = vunpack.c.l.b16 %v428
    %v499 = vunpack.c.l.b16 %v429
    %v500 = vunpack.c.l.b16 %v430
    %v501 = vunpack.c.l.b16 %v431
    %v502 = vunpack.c.l.b16 %v432
    %v503 = vunpack.c.l.b16 %v433
    %v504 = vunpack.c.l.b16 %v434
    %v505 = vunpack.c.l.b16 %v435
    %v506 = vunpack.c.l.b16 %v436
    %v507 = vunpack.c.l.b16 %v437
    %v508 = vunpack.c.l.b16 %v438
    %v509 = vunpack.c.l.b16 %v439
    %v510 = vunpack.c.l.b16 %v440
    %v511 = vunpack.c.l.b16 %v441
    %v512 = vunpack.c.l.b16 %v442
    %v513 = vunpack.c.l.b16 %v443
    %v514 = vunpack.c.l.b16 %v444
    %v515 = vunpack.c.l.b16 %v445
    %v516 = vunpack.c.l.b16 %v446
    %v517 = vunpack.c.l.b16 %v447
    %v518 = vunpack.c.l.b16 %v448
    %v519 = vunpack.c.l.b16 %v449
    %v520 = vunpack.c.l.b16 %v450
    %v521 = vunpack.c.l.b16 %v451
    %v522 = vunpack.c.l.b16 %v452
    %v523 = vpack.c.b16 %v492, %v491
    %v524 = vpack.c.b16 %v494, %v493
    %v525 = vpack.c.b16 %v496, %v495
    %v526 = vpack.c.b16 %v498, %v497
    %v527 = vpack.c.b16 %v500, %v499
    %v528 = vpack.c.b16 %v502, %v501
    %v529 = vpack.c.b16 %v504, %v503
    %v530 = vpack.c.b16 %v506, %v505
    %v531 = vpack.c.b16 %v508, %v507
    %v532 = vpack.c.b16 %v510, %v509
    %v533 = vpack.c.b16 %v512, %v511
    %v534 = vpack.c.b16 %v514, %v513
    %v535 = vpack.c.b16 %v516, %v515
    %v536 = vpack.c.b16 %v518, %v517
    %v537 = vpack.c.b16 %v520, %v519
    %v538 = vpack.c.b16 %v522, %v521
    %555 = vmatprep.subr.bf16.mxu0 0
    %556 = vmatpush1.bf16.msra.mxu0 %v530
    %557 = vmatprep.subr.bf16.mxu0 0
    %558 = vmatpush1.bf16.msra.mxu0 %v529
    %559 = vmatprep.subr.bf16.mxu0 0
    %560 = vmatpush1.bf16.msra.mxu0 %v528
    %561 = vmatprep.subr.bf16.mxu0 0
    %562 = vmatpush1.bf16.msra.mxu0 %v527
    %563 = vmatprep.subr.bf16.mxu0 0
    %564 = vmatpush1.bf16.msra.mxu0 %v526
    %565 = vmatprep.subr.bf16.mxu0 0
    %566 = vmatpush1.bf16.msra.mxu0 %v525
    %567 = vmatprep.subr.bf16.mxu0 0
    %568 = vmatpush1.bf16.msra.mxu0 %v524
    %569 = vmatprep.subr.bf16.mxu0 0
    %570 = vmatpush1.bf16.msra.mxu0 %v523
    %571 = vmatprep.subr.bf16.mxu0 0
    %572 = vmatpush2.bf16.msra.mxu0 %v538
    %573 = vmatprep.subr.bf16.mxu0 0
    %574 = vmatpush2.bf16.msra.mxu0 %v537
    %575 = vmatprep.subr.bf16.mxu0 0
    %576 = vmatpush2.bf16.msra.mxu0 %v536
    %577 = vmatprep.subr.bf16.mxu0 0
    %578 = vmatpush2.bf16.msra.mxu0 %v535
    %579 = vmatprep.subr.bf16.mxu0 0
    %580 = vmatpush2.bf16.msra.mxu0 %v534
    %581 = vmatprep.subr.bf16.mxu0 0
    %582 = vmatpush2.bf16.msra.mxu0 %v533
    %583 = vmatprep.subr.bf16.mxu0 0
    %584 = vmatpush2.bf16.msra.mxu0 %v532
    %585 = vmatprep.subr.bf16.mxu0 0
    %586 = vmatpush2.bf16.msra.mxu0 %v531
    %587 = vmatprep.mubr.bf16.mxu0 %v420
    %588 = vmatmul.mubr.bf16.gmra.mxu0 %v419
    %v589 = vpop.f32.mrf.mxu0
    %v590 = vadd.f32 %v457, %v589
    %v591 = vpop.f32.mrf.mxu0
    %v592 = vpop.f32.mrf.mxu0
    %v593 = vadd.f32 %v457, %v592
    %v594 = vpop.f32.mrf.mxu0
    %595 = vdwg.mxu0
    %v596 = vtanh.pop %v590
    %v597 = vtanh.pop %v593
    %598 = vst [vmem:[#allocation10] sm:$0xff] %v596
    %599 = vst [vmem:[#allocation10 + $0x8] sm:$0xff] %v597
    // Predicated region
    $region46: #{tpu_custom_call.1} parent=1 // pred_check
      _
    $region47: #{tpu_custom_call.1} parent=1 // pred_check_branch
      %601 = sbr.rel (0) target = $region49
    $region48: #{tpu_custom_call.1} parent=1 // pred_region
      %s603 = ssub.s32 256, 256
      %604 = vsyncadd [#allocation4], %s603
      %s605 = sshll.u32 [#allocation10], 4
      %s606 = int_to_ptr.vmem [resolvable:$true] %s605
      %611 = dma.vmem_to_hbm [thread:$0]  %s606, 256, %s7, [#allocation4], 128, 128, 8
    $region49: #{tpu_custom_call.1} parent=1 // pred_fallthru
      _
    // Predicated region
    $region50: #{tpu_custom_call.1} parent=1 // pred_check
      _
    $region51: #{tpu_custom_call.1} parent=1 // pred_check_branch
      %613 = sbr.rel (0) target = $region53
    $region52: #{tpu_custom_call.1} parent=1 // pred_region
      %614 = dma.done [#allocation4], 256
    $region53: #{tpu_custom_call.1} parent=1 // pred_fallthru
      _
    %615 = vsyncpa [#allocation3], 1
    %616 = vsyncpa [#allocation6], 1
    %617 = vsyncpa [#allocation9], 1
    %618 = vsyncpa [#allocation4], 1

</llo_original>
